<compile_context>
chip_gen: v5e
topology: v5e:2x2
jax: 0.10.0
libtpu: 0.0.40
codegen_flags: <defaults>
</compile_context>

<pallas_src>
import math
import functools

import jax
import jax.numpy as jnp
from jax.experimental import pallas as pl
from jax.experimental.pallas import tpu as pltpu


_VMEM_LIMIT = 64 * 1024 * 1024  # <= physical VMEM on every gen (v7x: 64 MiB)


# --------------------------------------------------------------------------- #
# Kernel A: fused K/V projection, written directly in (B, H, S, Dh) layout so  #
# the attention kernel never has to relayout heads in-kernel.                  #
# --------------------------------------------------------------------------- #
def _kv_proj_kernel(x_ref, wkv_ref, k_ref, v_ref, *, head_dim, compute_dtype):
    # x_ref: (1, ts, D);  wkv_ref: (1, D, 2*Dh) = [wk_h | wv_h];  k/v_ref: (1, 1, ts, Dh)
    x = x_ref[0].astype(compute_dtype)                                  # (ts, D)
    kv = jnp.dot(x, wkv_ref[0], preferred_element_type=jnp.float32)     # (ts, 2*Dh)
    k_ref[0, 0] = kv[:, :head_dim].astype(k_ref.dtype)
    v_ref[0, 0] = kv[:, head_dim:].astype(v_ref.dtype)


# --------------------------------------------------------------------------- #
# Kernel B: flash attention (online softmax) with fused Q projection and       #
# fused output projection (per-head accumulation into a (tq, D) f32 scratch).  #
# --------------------------------------------------------------------------- #
def _flash_attn_kernel(xq_ref, wq_ref, k_ref, v_ref, wo_ref, o_ref,
                       q_sc, m_sc, l_sc, acc_sc, oacc_sc, *, compute_dtype):
    h = pl.program_id(2)
    ki = pl.program_id(3)
    nh = pl.num_programs(2)
    nk = pl.num_programs(3)

    # One f32 output accumulator per (batch, q-tile); zero on the first (h, kv) step.
    @pl.when(jnp.logical_and(h == 0, ki == 0))
    def _():
        oacc_sc[...] = jnp.zeros_like(oacc_sc)

    # Per-head init: project Q once (softmax scale already folded into wq) and reset
    # the online-softmax state.
    @pl.when(ki == 0)
    def _():
        xq = xq_ref[0].astype(compute_dtype)                            # (tq, D)
        q_sc[...] = jnp.dot(xq, wq_ref[0],
                            preferred_element_type=jnp.float32).astype(compute_dtype)
        m_sc[...] = jnp.full_like(m_sc, -jnp.inf)
        l_sc[...] = jnp.zeros_like(l_sc)
        acc_sc[...] = jnp.zeros_like(acc_sc)

    k = k_ref[0, 0]                                                     # (tkv, Dh)
    v = v_ref[0, 0]                                                     # (tkv, Dh)

    # Scores: contract the head dim of both operands directly (no explicit k.T).
    s = jnp.einsum('qd,kd->qk', q_sc[...], k,
                   preferred_element_type=jnp.float32)                  # (tq, tkv) f32

    # Online softmax, state kept in f32.
    m_prev = m_sc[...]
    m_new = jnp.maximum(m_prev, jnp.max(s, axis=-1, keepdims=True))
    alpha = jnp.exp(m_prev - m_new)
    p = jnp.exp(s - m_new)
    l_sc[...] = alpha * l_sc[...] + jnp.sum(p, axis=-1, keepdims=True)
    acc_sc[...] = alpha * acc_sc[...] + jnp.dot(p.astype(compute_dtype), v,
                                                preferred_element_type=jnp.float32)
    m_sc[...] = m_new

    # Per-head epilogue: normalize (approx reciprocal -> EUP slot) and fold this
    # head's slice of the output projection into the shared accumulator.
    @pl.when(ki == nk - 1)
    def _():
        inv_l = pl.reciprocal(l_sc[...], approx=True)                   # (tq, 1)
        o_h = (acc_sc[...] * inv_l).astype(compute_dtype)               # (tq, Dh)
        oacc_sc[...] += jnp.dot(o_h, wo_ref[0],
                                preferred_element_type=jnp.float32)     # (tq, D)

    # Lane-dense (tq, D) store, once per (batch, q-tile).
    @pl.when(jnp.logical_and(h == nh - 1, ki == nk - 1))
    def _():
        o_ref[0] = oacc_sc[...].astype(o_ref.dtype)


def attention_forward(x, wq, wk, wv, wo, *, num_heads,
                      block_q=128, block_kv=128, block_s=128, compute_dtype=None):
    B, S, D = x.shape
    assert D % num_heads == 0
    Dh = D // num_heads
    H = num_heads
    if compute_dtype is None:
        compute_dtype = x.dtype
    compute_dtype = jnp.dtype(compute_dtype)

    block_q = min(block_q, S)
    block_kv = min(block_kv, S)
    block_s = min(block_s, S)
    assert S % block_q == 0 and S % block_kv == 0 and S % block_s == 0, (
        "sequence length must be divisible by the block sizes")

    # --- Weight layout plumbing (tiny one-time XLA ops on weights, outside kernels) ---
    scale = 1.0 / math.sqrt(Dh)
    wq_r = (wq * scale).reshape(D, H, Dh).transpose(1, 0, 2).astype(compute_dtype)  # (H, D, Dh)
    wk_r = wk.reshape(D, H, Dh).transpose(1, 0, 2)
    wv_r = wv.reshape(D, H, Dh).transpose(1, 0, 2)
    wkv_r = jnp.concatenate([wk_r, wv_r], axis=-1).astype(compute_dtype)            # (H, D, 2*Dh)
    wo_r = wo.reshape(H, Dh, D).astype(compute_dtype)                               # (H, Dh, D)

    cbytes = compute_dtype.itemsize
    xbytes = jnp.dtype(x.dtype).itemsize
    n_s, n_q, n_kv = S // block_s, S // block_q, S // block_kv

    # --- Kernel A: K/V projection into (B, H, S, Dh) ---
    kv_cost = pl.CostEstimate(
        flops=int(4 * B * S * D * D),
        transcendentals=0,
        bytes_accessed=int(B * S * D * xbytes + B * n_s * 2 * D * D * cbytes
                           + 2 * B * S * D * cbytes))
    k_hs, v_hs = pl.pallas_call(
        functools.partial(_kv_proj_kernel, head_dim=Dh, compute_dtype=compute_dtype),
        out_shape=(jax.ShapeDtypeStruct((B, H, S, Dh), compute_dtype),
                   jax.ShapeDtypeStruct((B, H, S, Dh), compute_dtype)),
        grid_spec=pltpu.PrefetchScalarGridSpec(
            num_scalar_prefetch=0,
            grid=(B, n_s, H),
            in_specs=[
                pl.BlockSpec((1, block_s, D), lambda b, si, h: (b, si, 0)),
                pl.BlockSpec((1, D, 2 * Dh), lambda b, si, h: (h, 0, 0)),
            ],
            out_specs=[
                pl.BlockSpec((1, 1, block_s, Dh), lambda b, si, h: (b, h, si, 0)),
                pl.BlockSpec((1, 1, block_s, Dh), lambda b, si, h: (b, h, si, 0)),
            ]),
        compiler_params=pltpu.CompilerParams(
            dimension_semantics=("parallel", "parallel", "parallel"),
            vmem_limit_bytes=_VMEM_LIMIT),
        cost_estimate=kv_cost,
    )(x, wkv_r)

    # --- Kernel B: flash attention + fused Q projection + fused output projection ---
    attn_cost = pl.CostEstimate(
        flops=int(4 * B * S * D * D + 4 * B * S * S * D),
        transcendentals=int(B * H * S * S),
        bytes_accessed=int(B * S * D * xbytes
                           + 2 * n_q * B * S * D * cbytes
                           + B * n_q * 2 * D * D * cbytes
                           + B * S * D * xbytes))
    out = pl.pallas_call(
        functools.partial(_flash_attn_kernel, compute_dtype=compute_dtype),
        out_shape=jax.ShapeDtypeStruct((B, S, D), x.dtype),
        grid_spec=pltpu.PrefetchScalarGridSpec(
            num_scalar_prefetch=0,
            grid=(B, n_q, H, n_kv),
            in_specs=[
                pl.BlockSpec((1, block_q, D), lambda b, qi, h, ki: (b, qi, 0)),
                pl.BlockSpec((1, D, Dh), lambda b, qi, h, ki: (h, 0, 0)),
                pl.BlockSpec((1, 1, block_kv, Dh), lambda b, qi, h, ki: (b, h, ki, 0)),
                pl.BlockSpec((1, 1, block_kv, Dh), lambda b, qi, h, ki: (b, h, ki, 0)),
                pl.BlockSpec((1, Dh, D), lambda b, qi, h, ki: (h, 0, 0)),
            ],
            out_specs=pl.BlockSpec((1, block_q, D), lambda b, qi, h, ki: (b, qi, 0)),
            scratch_shapes=[
                pltpu.VMEM((block_q, Dh), compute_dtype),   # projected (pre-scaled) Q
                pltpu.VMEM((block_q, 1), jnp.float32),      # running max m
                pltpu.VMEM((block_q, 1), jnp.float32),      # running denom l
                pltpu.VMEM((block_q, Dh), jnp.float32),     # unnormalized PV accumulator
                pltpu.VMEM((block_q, D), jnp.float32),      # output-projection accumulator
            ]),
        compiler_params=pltpu.CompilerParams(
            dimension_semantics=("parallel", "parallel", "arbitrary", "arbitrary"),
            vmem_limit_bytes=_VMEM_LIMIT),
        cost_estimate=attn_cost,
    )(x, wq_r, k_hs, v_hs, wo_r)
    return out


def attention_reference(x, wq, wk, wv, wo, *, num_heads):
    B, S, D = x.shape
    Dh = D // num_heads
    hp = jax.lax.Precision.HIGHEST
    q = jnp.einsum('bsd,de->bse', x, wq, precision=hp).reshape(B, S, num_heads, Dh)
    k = jnp.einsum('bsd,de->bse', x, wk, precision=hp).reshape(B, S, num_heads, Dh)
    v = jnp.einsum('bsd,de->bse', x, wv, precision=hp).reshape(B, S, num_heads, Dh)
    s = jnp.einsum('bqhd,bkhd->bhqk', q, k, precision=hp) / math.sqrt(Dh)
    p = jax.nn.softmax(s, axis=-1)
    o = jnp.einsum('bhqk,bkhd->bqhd', p, v, precision=hp).reshape(B, S, D)
    return jnp.einsum('bsd,de->bse', o, wo, precision=hp)


if __name__ == "__main__":
    # Small but TPU-tile-aligned shapes: batch=2, seq=256, dim=256, heads=2 (head_dim=128).
    B, S, D = 2, 256, 256
    NUM_HEADS = 2

    key = jax.random.PRNGKey(0)
    kx, kq, kk, kv_, ko = jax.random.split(key, 5)
    x = jax.random.normal(kx, (B, S, D), dtype=jnp.float32)
    # Deterministic synthetic weights (shapes implied by MultiHeadAttention(dim, dim, dim)).
    wq = jax.random.normal(kq, (D, D), dtype=jnp.float32) * (1.0 / math.sqrt(D))
    wk = jax.random.normal(kk, (D, D), dtype=jnp.float32) * (1.0 / math.sqrt(D))
    wv = jax.random.normal(kv_, (D, D), dtype=jnp.float32) * (1.0 / math.sqrt(D))
    wo = jax.random.normal(ko, (D, D), dtype=jnp.float32) * (1.0 / math.sqrt(D))

    ref = attention_reference(x, wq, wk, wv, wo, num_heads=NUM_HEADS)

    # f32 MXU operands (v5e-friendly path): tighter check (approx-reciprocal slack).
    out_f32 = jax.block_until_ready(
        attention_forward(x, wq, wk, wv, wo, num_heads=NUM_HEADS,
                          compute_dtype=jnp.float32))
    assert out_f32.shape == (B, S, D)
    assert jnp.allclose(out_f32, ref, atol=1e-2, rtol=1e-2)

    # bf16 MXU operands with f32 accumulation (v6e/v7x fast path): looser check.
    out_bf16 = jax.block_until_ready(
        attention_forward(x, wq, wk, wv, wo, num_heads=NUM_HEADS,
                          compute_dtype=jnp.bfloat16))
    assert out_bf16.shape == (B, S, D)
    assert jnp.allclose(out_bf16, ref, atol=5e-2, rtol=5e-2)

    print("KERNEL_OK")
</pallas_src>

<mosaic_0001>
module attributes {stable_mosaic.version = 11 : i64} {
  func.func @_kv_proj_kernel(%arg0: i32, %arg1: i32, %arg2: i32, %arg3: memref<1x128x256xf32, #tpu.memory_space<vmem>>, %arg4: memref<1x256x256xf32, #tpu.memory_space<vmem>>, %arg5: memref<1x1x128x128xf32, #tpu.memory_space<vmem>>, %arg6: memref<1x1x128x128xf32, #tpu.memory_space<vmem>>) attributes {dimension_semantics = [#tpu.dimension_semantics<parallel>, #tpu.dimension_semantics<parallel>, #tpu.dimension_semantics<parallel>], iteration_bounds = array<i64: 2, 2, 2>, scalar_prefetch = 0 : i64, scratch_operands = 0 : i64, tpu.core_type = #tpu.core_type<tc>, window_params = [{transform_indices = @transform_0, window_bounds = array<i64: 1, 128, 256>}, {transform_indices = @transform_1, window_bounds = array<i64: 1, 256, 256>}, {transform_indices = @transform_2, window_bounds = array<i64: 1, 1, 128, 128>}, {transform_indices = @transform_3, window_bounds = array<i64: 1, 1, 128, 128>}]} {
    %c0 = arith.constant 0 : index
    %c0_0 = arith.constant 0 : index
    %c0_1 = arith.constant 0 : index
    %0 = vector.load %arg3[%c0, %c0_0, %c0_1] : memref<1x128x256xf32, #tpu.memory_space<vmem>>, vector<1x128x256xf32>
    %1 = vector.shape_cast %0 : vector<1x128x256xf32> to vector<128x256xf32>
    %c0_2 = arith.constant 0 : index
    %c0_3 = arith.constant 0 : index
    %c0_4 = arith.constant 0 : index
    %2 = vector.load %arg4[%c0_2, %c0_3, %c0_4] : memref<1x256x256xf32, #tpu.memory_space<vmem>>, vector<1x256x256xf32>
    %3 = vector.shape_cast %2 : vector<1x256x256xf32> to vector<256x256xf32>
    %cst = arith.constant dense<0.000000e+00> : vector<128x256xf32>
    %4 = tpu.matmul %1, %3, %cst {dimension_numbers = #tpu.dot_dimension_numbers<[1], [0], [0], [1], [0, 0, 1, 1], [], []>} : vector<128x256xf32>, vector<256x256xf32>, vector<128x256xf32> -> vector<128x256xf32>
    %5 = vector.extract_strided_slice %4 {offsets = [0, 0], sizes = [128, 128], strides = [1, 1]} : vector<128x256xf32> to vector<128x128xf32>
    %c0_5 = arith.constant 0 : index
    %c0_6 = arith.constant 0 : index
    %c0_7 = arith.constant 0 : index
    %c0_8 = arith.constant 0 : index
    %6 = vector.load %arg5[%c0_5, %c0_6, %c0_7, %c0_8] : memref<1x1x128x128xf32, #tpu.memory_space<vmem>>, vector<1x1x128x128xf32>
    %7 = vector.shape_cast %6 : vector<1x1x128x128xf32> to vector<128x128xf32>
    %8 = vector.shape_cast %5 : vector<128x128xf32> to vector<1x1x128x128xf32>
    tpu.vector_store %arg5[%c0_5, %c0_6, %c0_7, %c0_8], %8 {strides = array<i32>} : memref<1x1x128x128xf32, #tpu.memory_space<vmem>>, vector<1x1x128x128xf32>,
    %9 = vector.extract_strided_slice %4 {offsets = [0, 128], sizes = [128, 128], strides = [1, 1]} : vector<128x256xf32> to vector<128x128xf32>
    %c0_9 = arith.constant 0 : index
    %c0_10 = arith.constant 0 : index
    %c0_11 = arith.constant 0 : index
    %c0_12 = arith.constant 0 : index
    %10 = vector.load %arg6[%c0_9, %c0_10, %c0_11, %c0_12] : memref<1x1x128x128xf32, #tpu.memory_space<vmem>>, vector<1x1x128x128xf32>
    %11 = vector.shape_cast %10 : vector<1x1x128x128xf32> to vector<128x128xf32>
    %12 = vector.shape_cast %9 : vector<128x128xf32> to vector<1x1x128x128xf32>
    tpu.vector_store %arg6[%c0_9, %c0_10, %c0_11, %c0_12], %12 {strides = array<i32>} : memref<1x1x128x128xf32, #tpu.memory_space<vmem>>, vector<1x1x128x128xf32>,
    return
  }
  func.func @transform_0(%arg0: i32, %arg1: i32, %arg2: i32) -> (i32, i32, i32) {
    %c0_i32 = arith.constant 0 : i32
    %c0_i32_0 = arith.constant 0 : i32
    return %arg0, %arg1, %c0_i32 : i32, i32, i32
  }
  func.func @transform_1(%arg0: i32, %arg1: i32, %arg2: i32) -> (i32, i32, i32) {
    %c0_i32 = arith.constant 0 : i32
    %c0_i32_0 = arith.constant 0 : i32
    %c0_i32_1 = arith.constant 0 : i32
    return %arg2, %c0_i32, %c0_i32_0 : i32, i32, i32
  }
  func.func @transform_2(%arg0: i32, %arg1: i32, %arg2: i32) -> (i32, i32, i32, i32) {
    %c0_i32 = arith.constant 0 : i32
    %c0_i32_0 = arith.constant 0 : i32
    return %arg0, %arg2, %arg1, %c0_i32 : i32, i32, i32, i32
  }
  func.func @transform_3(%arg0: i32, %arg1: i32, %arg2: i32) -> (i32, i32, i32, i32) {
    %c0_i32 = arith.constant 0 : i32
    %c0_i32_0 = arith.constant 0 : i32
    return %arg0, %arg2, %arg1, %c0_i32 : i32, i32, i32, i32
  }
}

</mosaic_0001>

<llo_original>
// kernel: tpu_custom_call.1
$region0: #{tpu_custom_call.1}
  #allocation0 [shape = 'u32[]', space=smem, size = 0x4, offset = 0x4, fixed_abs, tag = 'smem constant byte address 0x4 - core index']
  #allocation1 [shape = 'u32[72,128]{1,0:T(1,128)}', space=vmem, size = 0x9000, scoped, tag = 'internal scratch']
  %s0 = inlined_call_operand.hbm [shape: f32[2,256,256], index: 0, kind: input, shape index: {}]
  %s1 = inlined_call_operand.hbm [shape: f32[2,256,256], index: 1, kind: input, shape index: {}]
  %s2 = inlined_call_operand.hbm [shape: f32[2,2,256,128], index: 2, kind: output, shape index: {0}]
  %s3 = inlined_call_operand.hbm [shape: f32[2,2,256,128], index: 3, kind: output, shape index: {1}]
  %4 = xla_tuple %s2, %s3
  %s5 = sld [smem:[#allocation0]]
  $region57: #{tpu_custom_call.1} parent=0
    _
  %s7 = ssub.s32 1, %s5
  %s8 = scalar_select 0, %s7, %s5
  $region1: #{tpu_custom_call.1} parent=0
    #allocation2 [shape = 'u8[262144]{0}', space=vmem, size = 0x40000, scoped, tag = 'input window, operand 0']
    #allocation3 [shape = 's32[2]{0}', space=sflag, size = 0x8, scoped, tag = 'scoped memory for tpu_custom_call.1']
    #allocation4 [shape = 's32[2]{0}', space=sflag, size = 0x8, scoped, tag = 'scoped memory for tpu_custom_call.1']
    #allocation5 [shape = 'u8[524288]{0}', space=vmem, size = 0x80000, scoped, tag = 'input window, operand 1']
    #allocation6 [shape = 's32[2]{0}', space=sflag, size = 0x8, scoped, tag = 'scoped memory for tpu_custom_call.1']
    #allocation7 [shape = 'u8[131072]{0}', space=vmem, size = 0x20000, scoped, tag = 'output window, operand 0']
    #allocation8 [shape = 'u8[131072]{0}', space=vmem, size = 0x20000, scoped, tag = 'output window, operand 1']
    #allocation9 [shape = 's32[2]{0}', space=sflag, size = 0x8, scoped, tag = 'scoped memory for tpu_custom_call.1']
    %9 = vsyncpa [#allocation3], 0
    %s10 = scalar_lea.sflag [#allocation3], 1
    %11 = vsyncpa %s10, 0
    %12 = vsyncpa [#allocation6], 0
    %s13 = scalar_lea.sflag [#allocation6], 1
    %14 = vsyncpa %s13, 0
    %15 = vsyncpa [#allocation4], 0
    %s16 = scalar_lea.sflag [#allocation4], 1
    %17 = vsyncpa %s16, 0
    %18 = vsyncpa [#allocation9], 0
    %s19 = scalar_lea.sflag [#allocation9], 1
    %20 = vsyncpa %s19, 0
    loop: start=0, step=1, limit=10
    $region2: #{tpu_custom_call.1} parent=1 // loop_pre_header
      _
    $region3: #{tpu_custom_call.1} parent=1 // loop_header
      %s22 = sphi 0, %s26
      %p23 = scmp.ge.s32.totalorder %s22, 10
      %s29 = sphi 0, %s48
      %s30 = sphi 0, %s44
      %s31 = sphi 0, %s40
      %s32 = sphi 0, %s29
      %s33 = sphi 0, %s30
      %s34 = sphi 0, %s31
      %s35 = sphi 0, %s32
      %s36 = sphi 0, %s33
      %s37 = sphi 0, %s34
      %s53 = sphi 0, %s55
      %s56 = sphi 0, %s53
      %s57 = sphi 0, %s56
      %s73 = sphi 0, %s57
      %s79 = sphi 0, %s81
      %s82 = sphi 0, %s79
      %s83 = sphi 0, %s82
      %s99 = sphi 0, %s83
      %s109 = sphi 0, %s111
      %s112 = sphi 0, %s109
      %s113 = sphi 0, %s112
      %s129 = sphi 0, %s113
      %s139 = sphi 0, %s141
      %s142 = sphi 0, %s139
      %s143 = sphi 0, %s142
      %s159 = sphi 0, %s143
    $region4: #{tpu_custom_call.1} parent=1 // loop_header_branch
      %25 = sbr.rel (%p23) target = $region8
    $region5: #{tpu_custom_call.1} parent=1 // loop_body
      %s27 = ssub.s32 %s22, 1
      %s28 = ssub.s32 %s22, 2
      %s38 = sadd.s32 1, %s31
      %p39 = scmp.ge.s32.totalorder %s38, 2
      %s40 = scalar_select %p39, 0, %s38
      %s41 = sadd.s32 1, %s30
      %s42 = scalar_select %p39, %s41, %s30
      %p43 = scmp.ge.s32.totalorder %s42, 2
      %s44 = scalar_select %p43, 0, %s42
      %s45 = sadd.s32 1, %s29
      %s46 = scalar_select %p43, %s45, %s29
      %p47 = scmp.ge.s32.totalorder %s46, 2
      %s48 = scalar_select %p47, 0, %s46
      %s49 = ssub.s32 %s29, %s48
      %s50 = ssub.s32 %s30, %s44
      %s51 = sor.u32 %s49, %s50
      %p52 = scmp.eq.s32.totalorder %s51, 0
      %s54 = sadd.s32 %s53, 1
      %s55 = scalar_select %p52, %s53, %s54
      %p58 = pneg %p52
      %p59 = scmp.eq.s32.totalorder %s22, 7
      %p60 = por %p58, %p59
      %p61 = scmp.ne.s32.totalorder %s53, %s56
      %p62 = scmp.eq.s32.totalorder %s22, 0
      %p63 = por %p61, %p62
      %p64 = scmp.ne.s32.totalorder %s53, %s56
      %p65 = scmp.eq.s32.totalorder %s27, 7
      %p66 = por %p64, %p65
      %p67 = scmp.ne.s32.totalorder %s56, %s57
      %p68 = scmp.eq.s32.totalorder %s27, 0
      %p69 = por %p67, %p68
      %p70 = scmp.ne.s32.totalorder %s56, %s57
      %p71 = scmp.eq.s32.totalorder %s28, 7
      %p72 = por %p70, %p71
      %p74 = scmp.ne.s32.totalorder %s57, %s73
      %p75 = scmp.eq.s32.totalorder %s28, 0
      %p76 = por %p74, %p75
      %s77 = ssub.s32 %s31, %s40
      %p78 = scmp.eq.s32.totalorder %s77, 0
      %s80 = sadd.s32 %s79, 1
      %s81 = scalar_select %p78, %s79, %s80
      %p84 = pneg %p78
      %p85 = scmp.eq.s32.totalorder %s22, 7
      %p86 = por %p84, %p85
      %p87 = scmp.ne.s32.totalorder %s79, %s82
      %p88 = scmp.eq.s32.totalorder %s22, 0
      %p89 = por %p87, %p88
      %p90 = scmp.ne.s32.totalorder %s79, %s82
      %p91 = scmp.eq.s32.totalorder %s27, 7
      %p92 = por %p90, %p91
      %p93 = scmp.ne.s32.totalorder %s82, %s83
      %p94 = scmp.eq.s32.totalorder %s27, 0
      %p95 = por %p93, %p94
      %p96 = scmp.ne.s32.totalorder %s82, %s83
      %p97 = scmp.eq.s32.totalorder %s28, 7
      %p98 = por %p96, %p97
      %p100 = scmp.ne.s32.totalorder %s83, %s99
      %p101 = scmp.eq.s32.totalorder %s28, 0
      %p102 = por %p100, %p101
      %s103 = ssub.s32 %s29, %s48
      %s104 = ssub.s32 %s31, %s40
      %s105 = sor.u32 %s103, %s104
      %s106 = ssub.s32 %s30, %s44
      %s107 = sor.u32 %s105, %s106
      %p108 = scmp.eq.s32.totalorder %s107, 0
      %s110 = sadd.s32 %s109, 1
      %s111 = scalar_select %p108, %s109, %s110
      %p114 = pneg %p108
      %p115 = scmp.eq.s32.totalorder %s22, 7
      %p116 = por %p114, %p115
      %p117 = scmp.ne.s32.totalorder %s109, %s112
      %p118 = scmp.eq.s32.totalorder %s22, 0
      %p119 = por %p117, %p118
      %p120 = scmp.ne.s32.totalorder %s109, %s112
      %p121 = scmp.eq.s32.totalorder %s27, 7
      %p122 = por %p120, %p121
      %p123 = scmp.ne.s32.totalorder %s112, %s113
      %p124 = scmp.eq.s32.totalorder %s27, 0
      %p125 = por %p123, %p124
      %p126 = scmp.ne.s32.totalorder %s112, %s113
      %p127 = scmp.eq.s32.totalorder %s28, 7
      %p128 = por %p126, %p127
      %p130 = scmp.ne.s32.totalorder %s113, %s129
      %p131 = scmp.eq.s32.totalorder %s28, 0
      %p132 = por %p130, %p131
      %s133 = ssub.s32 %s29, %s48
      %s134 = ssub.s32 %s31, %s40
      %s135 = sor.u32 %s133, %s134
      %s136 = ssub.s32 %s30, %s44
      %s137 = sor.u32 %s135, %s136
      %p138 = scmp.eq.s32.totalorder %s137, 0
      %s140 = sadd.s32 %s139, 1
      %s141 = scalar_select %p138, %s139, %s140
      %p144 = pneg %p138
      %p145 = scmp.eq.s32.totalorder %s22, 7
      %p146 = por %p144, %p145
      %p147 = scmp.ne.s32.totalorder %s139, %s142
      %p148 = scmp.eq.s32.totalorder %s22, 0
      %p149 = por %p147, %p148
      %p150 = scmp.ne.s32.totalorder %s139, %s142
      %p151 = scmp.eq.s32.totalorder %s27, 7
      %p152 = por %p150, %p151
      %p153 = scmp.ne.s32.totalorder %s142, %s143
      %p154 = scmp.eq.s32.totalorder %s27, 0
      %p155 = por %p153, %p154
      %p156 = scmp.ne.s32.totalorder %s142, %s143
      %p157 = scmp.eq.s32.totalorder %s28, 7
      %p158 = por %p156, %p157
      %p160 = scmp.ne.s32.totalorder %s143, %s159
      %p161 = scmp.eq.s32.totalorder %s28, 0
      %p162 = por %p160, %p161
      %p163 = scmp.le.s32.totalorder 1, %s22
      %p164 = scmp.lt.s32.totalorder %s22, 9
      %p165 = pnand %p163, %p164
      %p166 = pneg %p165
      // Predicated region
      $region9: #{tpu_custom_call.1} parent=5 // pred_check
        _
      $region10: #{tpu_custom_call.1} parent=5 // pred_check_branch
        %168 = sbr.rel (%p165) target = $region12
      $region11: #{tpu_custom_call.1} parent=5 // pred_region
        %s169 = ssub.s32 %s22, 1
      $region12: #{tpu_custom_call.1} parent=5 // pred_fallthru
        _
      %p170 = scmp.lt.s32.totalorder %s22, 8
      // Predicated region
      $region13: #{tpu_custom_call.1} parent=5 // pred_check
        %p171 = pneg %p170
      $region14: #{tpu_custom_call.1} parent=5 // pred_check_branch
        %173 = sbr.rel (%p171) target = $region16
      $region15: #{tpu_custom_call.1} parent=5 // pred_region
        // Predicated region
        $region17: #{tpu_custom_call.1} parent=15 // pred_check
          %p174 = pneg %p63
        $region18: #{tpu_custom_call.1} parent=15 // pred_check_branch
          %176 = sbr.rel (%p174) target = $region20
        $region19: #{tpu_custom_call.1} parent=15 // pred_region
          %s177 = sand.u32 %s53, 1
          %s178 = scalar_lea.sflag [#allocation3], %s177
          %s179 = sand.u32 %s53, 1
          %s180 = smul.addr %s179, 256
          %s181 = scalar_lea.vmem [#allocation2], %s180
          %s182 = smul.u32 16, %s30
          %184 = vsyncadd %s178, 0
          %s185 = smul.addr %s182, 2
          %s186 = smul.addr %s29, 64
          %s187 = sadd.s32 %s185, %s186
          %s188 = smul.addr %s187, 8
          %s189 = scalar_lea.hbm %s0, %s188
          %s190 = sshll.u32 %s189, 4
          %s191 = int_to_ptr.hbm [resolvable:$true] %s190
          %s192 = sshll.u32 %s181, 4
          %s193 = int_to_ptr.vmem [resolvable:$true] %s192
          %198 = dma.hbm_to_vmem [thread:$0]  %s191, 4096, %s193, %s178, 256, 256, 16
        $region20: #{tpu_custom_call.1} parent=15 // pred_fallthru
          _
        // Predicated region
        $region21: #{tpu_custom_call.1} parent=15 // pred_check
          %p199 = pneg %p89
        $region22: #{tpu_custom_call.1} parent=15 // pred_check_branch
          %201 = sbr.rel (%p199) target = $region24
        $region23: #{tpu_custom_call.1} parent=15 // pred_region
          %s202 = sand.u32 %s79, 1
          %s203 = scalar_lea.sflag [#allocation6], %s202
          %s204 = sand.u32 %s79, 1
          %s205 = smul.addr %s204, 512
          %s206 = scalar_lea.vmem [#allocation5], %s205
          %208 = vsyncadd %s203, 0
          %s209 = smul.addr %s31, 64
          %s210 = smul.addr %s209, 8
          %s211 = scalar_lea.hbm %s1, %s210
          %s212 = sshll.u32 %s211, 4
          %s213 = int_to_ptr.hbm [resolvable:$true] %s212
          %s214 = sshll.u32 %s206, 4
          %s215 = int_to_ptr.vmem [resolvable:$true] %s214
          %220 = dma.hbm_to_vmem [thread:$0]  %s213, 8192, %s215, %s203, 256, 256, 16
        $region24: #{tpu_custom_call.1} parent=15 // pred_fallthru
          _
      $region16: #{tpu_custom_call.1} parent=5 // pred_fallthru
        _
      %p221 = scmp.le.s32.totalorder 1, %s22
      %p222 = scmp.lt.s32.totalorder %s22, 9
      %p223 = pnand %p221, %p222
      %p224 = pneg %p223
      // Predicated region
      $region25: #{tpu_custom_call.1} parent=5 // pred_check
        _
      $region26: #{tpu_custom_call.1} parent=5 // pred_check_branch
        %226 = sbr.rel (%p223) target = $region28
      $region27: #{tpu_custom_call.1} parent=5 // pred_region
        %s227 = ssub.s32 %s22, 1
        %s228 = sand.u32 %s56, 1
        %s229 = scalar_lea.sflag [#allocation3], %s228
        %s230 = sand.u32 %s56, 1
        %s231 = smul.addr %s230, 256
        %s232 = scalar_lea.vmem [#allocation2], %s231
        // Predicated region
        $region29: #{tpu_custom_call.1} parent=27 // pred_check
          %p233 = pneg %p69
        $region30: #{tpu_custom_call.1} parent=27 // pred_check_branch
          %235 = sbr.rel (%p233) target = $region32
        $region31: #{tpu_custom_call.1} parent=27 // pred_region
          %237 = dma.done %s229, 4096
        $region32: #{tpu_custom_call.1} parent=27 // pred_fallthru
          _
        %s238 = sand.u32 %s82, 1
        %s239 = scalar_lea.sflag [#allocation6], %s238
        %s240 = sand.u32 %s82, 1
        %s241 = smul.addr %s240, 512
        %s242 = scalar_lea.vmem [#allocation5], %s241
        // Predicated region
        $region33: #{tpu_custom_call.1} parent=27 // pred_check
          %p243 = pneg %p95
        $region34: #{tpu_custom_call.1} parent=27 // pred_check_branch
          %245 = sbr.rel (%p243) target = $region36
        $region35: #{tpu_custom_call.1} parent=27 // pred_region
          %247 = dma.done %s239, 8192
        $region36: #{tpu_custom_call.1} parent=27 // pred_fallthru
          _
        %s248 = sand.u32 %s56, 1
        %s249 = scalar_lea.sflag [#allocation3], %s248
        %s250 = sand.u32 %s56, 1
        %s251 = smul.addr %s250, 256
        %s252 = scalar_lea.vmem [#allocation2], %s251
        %p253 = pneg %p69
        %p254 = pneg %p66
        %s255 = sand.u32 %s82, 1
        %s256 = scalar_lea.sflag [#allocation6], %s255
        %s257 = sand.u32 %s82, 1
        %s258 = smul.addr %s257, 512
        %s259 = scalar_lea.vmem [#allocation5], %s258
        %p260 = pneg %p95
        %p261 = pneg %p92
        %p262 = pneg %p125
        %p263 = pneg %p122
        %s264 = sand.u32 %s112, 1
        %s265 = scalar_lea.sflag [#allocation4], %s264
        %s266 = sand.u32 %s112, 1
        %s267 = smul.addr %s266, 128
        %s268 = scalar_lea.vmem [#allocation7], %s267
        %p269 = pneg %p155
        %p270 = pneg %p152
        %s271 = sand.u32 %s142, 1
        %s272 = scalar_lea.sflag [#allocation9], %s271
        %s273 = sand.u32 %s142, 1
        %s274 = smul.addr %s273, 128
        %s275 = scalar_lea.vmem [#allocation8], %s274
        %s276 = smul.u32 16, %s33
        %s277 = smul.u32 16, %s33
        %s278 = smul.u32 16, %s33
        %v279 = vld [vmem:[%s232] sm:$0xff]
        %v280 = vld [vmem:[%s232 + $0x8] sm:$0xff]
        %v281 = vld [vmem:[%s232 + $0x10] sm:$0xff]
        %v282 = vld [vmem:[%s232 + $0x18] sm:$0xff]
        %v283 = vld [vmem:[%s232 + $0x20] sm:$0xff]
        %v284 = vld [vmem:[%s232 + $0x28] sm:$0xff]
        %v285 = vld [vmem:[%s232 + $0x30] sm:$0xff]
        %v286 = vld [vmem:[%s232 + $0x38] sm:$0xff]
        %v287 = vld [vmem:[%s232 + $0x40] sm:$0xff]
        %v288 = vld [vmem:[%s232 + $0x48] sm:$0xff]
        %v289 = vld [vmem:[%s232 + $0x50] sm:$0xff]
        %v290 = vld [vmem:[%s232 + $0x58] sm:$0xff]
        %v291 = vld [vmem:[%s232 + $0x60] sm:$0xff]
        %v292 = vld [vmem:[%s232 + $0x68] sm:$0xff]
        %v293 = vld [vmem:[%s232 + $0x70] sm:$0xff]
        %v294 = vld [vmem:[%s232 + $0x78] sm:$0xff]
        %v295 = vld [vmem:[%s232 + $0x80] sm:$0xff]
        %v296 = vld [vmem:[%s232 + $0x88] sm:$0xff]
        %v297 = vld [vmem:[%s232 + $0x90] sm:$0xff]
        %v298 = vld [vmem:[%s232 + $0x98] sm:$0xff]
        %v299 = vld [vmem:[%s232 + $0xa0] sm:$0xff]
        %v300 = vld [vmem:[%s232 + $0xa8] sm:$0xff]
        %v301 = vld [vmem:[%s232 + $0xb0] sm:$0xff]
        %v302 = vld [vmem:[%s232 + $0xb8] sm:$0xff]
        %v303 = vld [vmem:[%s232 + $0xc0] sm:$0xff]
        %v304 = vld [vmem:[%s232 + $0xc8] sm:$0xff]
        %v305 = vld [vmem:[%s232 + $0xd0] sm:$0xff]
        %v306 = vld [vmem:[%s232 + $0xd8] sm:$0xff]
        %v307 = vld [vmem:[%s232 + $0xe0] sm:$0xff]
        %v308 = vld [vmem:[%s232 + $0xe8] sm:$0xff]
        %v309 = vld [vmem:[%s232 + $0xf0] sm:$0xff]
        %v310 = vld [vmem:[%s232 + $0xf8] sm:$0xff]
        %v311 = vld [vmem:[%s242] sm:$0xff]
        %v312 = vld [vmem:[%s242 + $0x8] sm:$0xff]
        %v313 = vld [vmem:[%s242 + $0x10] sm:$0xff]
        %v314 = vld [vmem:[%s242 + $0x18] sm:$0xff]
        %v315 = vld [vmem:[%s242 + $0x20] sm:$0xff]
        %v316 = vld [vmem:[%s242 + $0x28] sm:$0xff]
        %v317 = vld [vmem:[%s242 + $0x30] sm:$0xff]
        %v318 = vld [vmem:[%s242 + $0x38] sm:$0xff]
        %v319 = vld [vmem:[%s242 + $0x40] sm:$0xff]
        %v320 = vld [vmem:[%s242 + $0x48] sm:$0xff]
        %v321 = vld [vmem:[%s242 + $0x50] sm:$0xff]
        %v322 = vld [vmem:[%s242 + $0x58] sm:$0xff]
        %v323 = vld [vmem:[%s242 + $0x60] sm:$0xff]
        %v324 = vld [vmem:[%s242 + $0x68] sm:$0xff]
        %v325 = vld [vmem:[%s242 + $0x70] sm:$0xff]
        %v326 = vld [vmem:[%s242 + $0x78] sm:$0xff]
        %v327 = vld [vmem:[%s242 + $0x80] sm:$0xff]
        %v328 = vld [vmem:[%s242 + $0x88] sm:$0xff]
        %v329 = vld [vmem:[%s242 + $0x90] sm:$0xff]
        %v330 = vld [vmem:[%s242 + $0x98] sm:$0xff]
        %v331 = vld [vmem:[%s242 + $0xa0] sm:$0xff]
        %v332 = vld [vmem:[%s242 + $0xa8] sm:$0xff]
        %v333 = vld [vmem:[%s242 + $0xb0] sm:$0xff]
        %v334 = vld [vmem:[%s242 + $0xb8] sm:$0xff]
        %v335 = vld [vmem:[%s242 + $0xc0] sm:$0xff]
        %v336 = vld [vmem:[%s242 + $0xc8] sm:$0xff]
        %v337 = vld [vmem:[%s242 + $0xd0] sm:$0xff]
        %v338 = vld [vmem:[%s242 + $0xd8] sm:$0xff]
        %v339 = vld [vmem:[%s242 + $0xe0] sm:$0xff]
        %v340 = vld [vmem:[%s242 + $0xe8] sm:$0xff]
        %v341 = vld [vmem:[%s242 + $0xf0] sm:$0xff]
        %v342 = vld [vmem:[%s242 + $0xf8] sm:$0xff]
        %v343 = vld [vmem:[%s242 + $0x100] sm:$0xff]
        %v344 = vld [vmem:[%s242 + $0x108] sm:$0xff]
        %v345 = vld [vmem:[%s242 + $0x110] sm:$0xff]
        %v346 = vld [vmem:[%s242 + $0x118] sm:$0xff]
        %v347 = vld [vmem:[%s242 + $0x120] sm:$0xff]
        %v348 = vld [vmem:[%s242 + $0x128] sm:$0xff]
        %v349 = vld [vmem:[%s242 + $0x130] sm:$0xff]
        %v350 = vld [vmem:[%s242 + $0x138] sm:$0xff]
        %v351 = vld [vmem:[%s242 + $0x140] sm:$0xff]
        %v352 = vld [vmem:[%s242 + $0x148] sm:$0xff]
        %v353 = vld [vmem:[%s242 + $0x150] sm:$0xff]
        %v354 = vld [vmem:[%s242 + $0x158] sm:$0xff]
        %v355 = vld [vmem:[%s242 + $0x160] sm:$0xff]
        %v356 = vld [vmem:[%s242 + $0x168] sm:$0xff]
        %v357 = vld [vmem:[%s242 + $0x170] sm:$0xff]
        %v358 = vld [vmem:[%s242 + $0x178] sm:$0xff]
        %v359 = vld [vmem:[%s242 + $0x180] sm:$0xff]
        %v360 = vld [vmem:[%s242 + $0x188] sm:$0xff]
        %v361 = vld [vmem:[%s242 + $0x190] sm:$0xff]
        %v362 = vld [vmem:[%s242 + $0x198] sm:$0xff]
        %v363 = vld [vmem:[%s242 + $0x1a0] sm:$0xff]
        %v364 = vld [vmem:[%s242 + $0x1a8] sm:$0xff]
        %v365 = vld [vmem:[%s242 + $0x1b0] sm:$0xff]
        %v366 = vld [vmem:[%s242 + $0x1b8] sm:$0xff]
        %v367 = vld [vmem:[%s242 + $0x1c0] sm:$0xff]
        %v368 = vld [vmem:[%s242 + $0x1c8] sm:$0xff]
        %v369 = vld [vmem:[%s242 + $0x1d0] sm:$0xff]
        %v370 = vld [vmem:[%s242 + $0x1d8] sm:$0xff]
        %v371 = vld [vmem:[%s242 + $0x1e0] sm:$0xff]
        %v372 = vld [vmem:[%s242 + $0x1e8] sm:$0xff]
        %v373 = vld [vmem:[%s242 + $0x1f0] sm:$0xff]
        %v374 = vld [vmem:[%s242 + $0x1f8] sm:$0xff]
        %375 = vmatpush.msra.mxu0 %v341
        %376 = vmatpush.msra.mxu0 %v339
        %377 = vmatpush.msra.mxu0 %v337
        %378 = vmatpush.msra.mxu0 %v335
        %379 = vmatpush.msra.mxu0 %v333
        %380 = vmatpush.msra.mxu0 %v331
        %381 = vmatpush.msra.mxu0 %v329
        %382 = vmatpush.msra.mxu0 %v327
        %383 = vmatpush.msra.mxu0 %v325
        %384 = vmatpush.msra.mxu0 %v323
        %385 = vmatpush.msra.mxu0 %v321
        %386 = vmatpush.msra.mxu0 %v319
        %387 = vmatpush.msra.mxu0 %v317
        %388 = vmatpush.msra.mxu0 %v315
        %389 = vmatpush.msra.mxu0 %v313
        %390 = vmatpush.msra.mxu0 %v311
        %391 = vmatmul.f32.gmra.mxu0 %v279
        %v392 = vpop.f32.mrf.mxu0
        %v393 = vadd.f32 0.0, %v392
        %394 = vmatmul.f32.gmra.mxu0 %v281
        %v395 = vpop.f32.mrf.mxu0
        %v396 = vadd.f32 0.0, %v395
        %397 = vmatmul.f32.gmra.mxu0 %v283
        %v398 = vpop.f32.mrf.mxu0
        %v399 = vadd.f32 0.0, %v398
        %400 = vmatmul.f32.gmra.mxu0 %v285
        %v401 = vpop.f32.mrf.mxu0
        %v402 = vadd.f32 0.0, %v401
        %403 = vmatmul.f32.gmra.mxu0 %v287
        %v404 = vpop.f32.mrf.mxu0
        %v405 = vadd.f32 0.0, %v404
        %406 = vmatmul.f32.gmra.mxu0 %v289
        %v407 = vpop.f32.mrf.mxu0
        %v408 = vadd.f32 0.0, %v407
        %409 = vmatmul.f32.gmra.mxu0 %v291
        %v410 = vpop.f32.mrf.mxu0
        %v411 = vadd.f32 0.0, %v410
        %412 = vmatmul.f32.gmra.mxu0 %v293
        %v413 = vpop.f32.mrf.mxu0
        %v414 = vadd.f32 0.0, %v413
        %415 = vmatmul.f32.gmra.mxu0 %v295
        %v416 = vpop.f32.mrf.mxu0
        %v417 = vadd.f32 0.0, %v416
        %418 = vmatmul.f32.gmra.mxu0 %v297
        %v419 = vpop.f32.mrf.mxu0
        %v420 = vadd.f32 0.0, %v419
        %421 = vmatmul.f32.gmra.mxu0 %v299
        %v422 = vpop.f32.mrf.mxu0
        %v423 = vadd.f32 0.0, %v422
        %424 = vmatmul.f32.gmra.mxu0 %v301
        %v425 = vpop.f32.mrf.mxu0
        %v426 = vadd.f32 0.0, %v425
        %427 = vmatmul.f32.gmra.mxu0 %v303
        %v428 = vpop.f32.mrf.mxu0
        %v429 = vadd.f32 0.0, %v428
        %430 = vmatmul.f32.gmra.mxu0 %v305
        %v431 = vpop.f32.mrf.mxu0
        %v432 = vadd.f32 0.0, %v431
        %433 = vmatmul.f32.gmra.mxu0 %v307
        %v434 = vpop.f32.mrf.mxu0
        %v435 = vadd.f32 0.0, %v434
        %436 = vmatmul.f32.gmra.mxu0 %v309
        %v437 = vpop.f32.mrf.mxu0
        %v438 = vadd.f32 0.0, %v437
        %439 = vdwg.mxu0
        %440 = vmatpush.msra.mxu0 %v373
        %441 = vmatpush.msra.mxu0 %v371
        %442 = vmatpush.msra.mxu0 %v369
        %443 = vmatpush.msra.mxu0 %v367
        %444 = vmatpush.msra.mxu0 %v365
        %445 = vmatpush.msra.mxu0 %v363
        %446 = vmatpush.msra.mxu0 %v361
        %447 = vmatpush.msra.mxu0 %v359
        %448 = vmatpush.msra.mxu0 %v357
        %449 = vmatpush.msra.mxu0 %v355
        %450 = vmatpush.msra.mxu0 %v353
        %451 = vmatpush.msra.mxu0 %v351
        %452 = vmatpush.msra.mxu0 %v349
        %453 = vmatpush.msra.mxu0 %v347
        %454 = vmatpush.msra.mxu0 %v345
        %455 = vmatpush.msra.mxu0 %v343
        %456 = vmatmul.f32.gmra.mxu0 %v280
        %v457 = vpop.f32.mrf.mxu0
        %v458 = vadd.f32 %v393, %v457
        %459 = vmatmul.f32.gmra.mxu0 %v282
        %v460 = vpop.f32.mrf.mxu0
        %v461 = vadd.f32 %v396, %v460
        %462 = vmatmul.f32.gmra.mxu0 %v284
        %v463 = vpop.f32.mrf.mxu0
        %v464 = vadd.f32 %v399, %v463
        %465 = vmatmul.f32.gmra.mxu0 %v286
        %v466 = vpop.f32.mrf.mxu0
        %v467 = vadd.f32 %v402, %v466
        %468 = vmatmul.f32.gmra.mxu0 %v288
        %v469 = vpop.f32.mrf.mxu0
        %v470 = vadd.f32 %v405, %v469
        %471 = vmatmul.f32.gmra.mxu0 %v290
        %v472 = vpop.f32.mrf.mxu0
        %v473 = vadd.f32 %v408, %v472
        %474 = vmatmul.f32.gmra.mxu0 %v292
        %v475 = vpop.f32.mrf.mxu0
        %v476 = vadd.f32 %v411, %v475
        %477 = vmatmul.f32.gmra.mxu0 %v294
        %v478 = vpop.f32.mrf.mxu0
        %v479 = vadd.f32 %v414, %v478
        %480 = vmatmul.f32.gmra.mxu0 %v296
        %v481 = vpop.f32.mrf.mxu0
        %v482 = vadd.f32 %v417, %v481
        %483 = vmatmul.f32.gmra.mxu0 %v298
        %v484 = vpop.f32.mrf.mxu0
        %v485 = vadd.f32 %v420, %v484
        %486 = vmatmul.f32.gmra.mxu0 %v300
        %v487 = vpop.f32.mrf.mxu0
        %v488 = vadd.f32 %v423, %v487
        %489 = vmatmul.f32.gmra.mxu0 %v302
        %v490 = vpop.f32.mrf.mxu0
        %v491 = vadd.f32 %v426, %v490
        %492 = vmatmul.f32.gmra.mxu0 %v304
        %v493 = vpop.f32.mrf.mxu0
        %v494 = vadd.f32 %v429, %v493
        %495 = vmatmul.f32.gmra.mxu0 %v306
        %v496 = vpop.f32.mrf.mxu0
        %v497 = vadd.f32 %v432, %v496
        %498 = vmatmul.f32.gmra.mxu0 %v308
        %v499 = vpop.f32.mrf.mxu0
        %v500 = vadd.f32 %v435, %v499
        %501 = vmatmul.f32.gmra.mxu0 %v310
        %v502 = vpop.f32.mrf.mxu0
        %v503 = vadd.f32 %v438, %v502
        %504 = vdwg.mxu0
        %505 = vmatpush.msra.mxu0 %v342
        %506 = vmatpush.msra.mxu0 %v340
        %507 = vmatpush.msra.mxu0 %v338
        %508 = vmatpush.msra.mxu0 %v336
        %509 = vmatpush.msra.mxu0 %v334
        %510 = vmatpush.msra.mxu0 %v332
        %511 = vmatpush.msra.mxu0 %v330
        %512 = vmatpush.msra.mxu0 %v328
        %513 = vmatpush.msra.mxu0 %v326
        %514 = vmatpush.msra.mxu0 %v324
        %515 = vmatpush.msra.mxu0 %v322
        %516 = vmatpush.msra.mxu0 %v320
        %517 = vmatpush.msra.mxu0 %v318
        %518 = vmatpush.msra.mxu0 %v316
        %519 = vmatpush.msra.mxu0 %v314
        %520 = vmatpush.msra.mxu0 %v312
        %521 = vmatmul.f32.gmra.mxu0 %v279
        %v522 = vpop.f32.mrf.mxu0
        %v523 = vadd.f32 0.0, %v522
        %524 = vmatmul.f32.gmra.mxu0 %v281
        %v525 = vpop.f32.mrf.mxu0
        %v526 = vadd.f32 0.0, %v525
        %527 = vmatmul.f32.gmra.mxu0 %v283
        %v528 = vpop.f32.mrf.mxu0
        %v529 = vadd.f32 0.0, %v528
        %530 = vmatmul.f32.gmra.mxu0 %v285
        %v531 = vpop.f32.mrf.mxu0
        %v532 = vadd.f32 0.0, %v531
        %533 = vmatmul.f32.gmra.mxu0 %v287
        %v534 = vpop.f32.mrf.mxu0
        %v535 = vadd.f32 0.0, %v534
        %536 = vmatmul.f32.gmra.mxu0 %v289
        %v537 = vpop.f32.mrf.mxu0
        %v538 = vadd.f32 0.0, %v537
        %539 = vmatmul.f32.gmra.mxu0 %v291
        %v540 = vpop.f32.mrf.mxu0
        %v541 = vadd.f32 0.0, %v540
        %542 = vmatmul.f32.gmra.mxu0 %v293
        %v543 = vpop.f32.mrf.mxu0
        %v544 = vadd.f32 0.0, %v543
        %545 = vmatmul.f32.gmra.mxu0 %v295
        %v546 = vpop.f32.mrf.mxu0
        %v547 = vadd.f32 0.0, %v546
        %548 = vmatmul.f32.gmra.mxu0 %v297
        %v549 = vpop.f32.mrf.mxu0
        %v550 = vadd.f32 0.0, %v549
        %551 = vmatmul.f32.gmra.mxu0 %v299
        %v552 = vpop.f32.mrf.mxu0
        %v553 = vadd.f32 0.0, %v552
        %554 = vmatmul.f32.gmra.mxu0 %v301
        %v555 = vpop.f32.mrf.mxu0
        %v556 = vadd.f32 0.0, %v555
        %557 = vmatmul.f32.gmra.mxu0 %v303
        %v558 = vpop.f32.mrf.mxu0
        %v559 = vadd.f32 0.0, %v558
        %560 = vmatmul.f32.gmra.mxu0 %v305
        %v561 = vpop.f32.mrf.mxu0
        %v562 = vadd.f32 0.0, %v561
        %563 = vmatmul.f32.gmra.mxu0 %v307
        %v564 = vpop.f32.mrf.mxu0
        %v565 = vadd.f32 0.0, %v564
        %566 = vmatmul.f32.gmra.mxu0 %v309
        %v567 = vpop.f32.mrf.mxu0
        %v568 = vadd.f32 0.0, %v567
        %569 = vdwg.mxu0
        %570 = vmatpush.msra.mxu0 %v374
        %571 = vmatpush.msra.mxu0 %v372
        %572 = vmatpush.msra.mxu0 %v370
        %573 = vmatpush.msra.mxu0 %v368
        %574 = vmatpush.msra.mxu0 %v366
        %575 = vmatpush.msra.mxu0 %v364
        %576 = vmatpush.msra.mxu0 %v362
        %577 = vmatpush.msra.mxu0 %v360
        %578 = vmatpush.msra.mxu0 %v358
        %579 = vmatpush.msra.mxu0 %v356
        %580 = vmatpush.msra.mxu0 %v354
        %581 = vmatpush.msra.mxu0 %v352
        %582 = vmatpush.msra.mxu0 %v350
        %583 = vmatpush.msra.mxu0 %v348
        %584 = vmatpush.msra.mxu0 %v346
        %585 = vmatpush.msra.mxu0 %v344
        %586 = vmatmul.f32.gmra.mxu0 %v280
        %v587 = vpop.f32.mrf.mxu0
        %v588 = vadd.f32 %v523, %v587
        %589 = vmatmul.f32.gmra.mxu0 %v282
        %v590 = vpop.f32.mrf.mxu0
        %v591 = vadd.f32 %v526, %v590
        %592 = vmatmul.f32.gmra.mxu0 %v284
        %v593 = vpop.f32.mrf.mxu0
        %v594 = vadd.f32 %v529, %v593
        %595 = vmatmul.f32.gmra.mxu0 %v286
        %v596 = vpop.f32.mrf.mxu0
        %v597 = vadd.f32 %v532, %v596
        %598 = vmatmul.f32.gmra.mxu0 %v288
        %v599 = vpop.f32.mrf.mxu0
        %v600 = vadd.f32 %v535, %v599
        %601 = vmatmul.f32.gmra.mxu0 %v290
        %v602 = vpop.f32.mrf.mxu0
        %v603 = vadd.f32 %v538, %v602
        %604 = vmatmul.f32.gmra.mxu0 %v292
        %v605 = vpop.f32.mrf.mxu0
        %v606 = vadd.f32 %v541, %v605
        %607 = vmatmul.f32.gmra.mxu0 %v294
        %v608 = vpop.f32.mrf.mxu0
        %v609 = vadd.f32 %v544, %v608
        %610 = vmatmul.f32.gmra.mxu0 %v296
        %v611 = vpop.f32.mrf.mxu0
        %v612 = vadd.f32 %v547, %v611
        %613 = vmatmul.f32.gmra.mxu0 %v298
        %v614 = vpop.f32.mrf.mxu0
        %v615 = vadd.f32 %v550, %v614
        %616 = vmatmul.f32.gmra.mxu0 %v300
        %v617 = vpop.f32.mrf.mxu0
        %v618 = vadd.f32 %v553, %v617
        %619 = vmatmul.f32.gmra.mxu0 %v302
        %v620 = vpop.f32.mrf.mxu0
        %v621 = vadd.f32 %v556, %v620
        %622 = vmatmul.f32.gmra.mxu0 %v304
        %v623 = vpop.f32.mrf.mxu0
        %v624 = vadd.f32 %v559, %v623
        %625 = vmatmul.f32.gmra.mxu0 %v306
        %v626 = vpop.f32.mrf.mxu0
        %v627 = vadd.f32 %v562, %v626
        %628 = vmatmul.f32.gmra.mxu0 %v308
        %v629 = vpop.f32.mrf.mxu0
        %v630 = vadd.f32 %v565, %v629
        %631 = vmatmul.f32.gmra.mxu0 %v310
        %v632 = vpop.f32.mrf.mxu0
        %v633 = vadd.f32 %v568, %v632
        %634 = vdwg.mxu0
        %635 = vst [vmem:[%s268] sm:$0xff] %v458
        %636 = vst [vmem:[%s268 + $0x8] sm:$0xff] %v461
        %637 = vst [vmem:[%s268 + $0x10] sm:$0xff] %v464
        %638 = vst [vmem:[%s268 + $0x18] sm:$0xff] %v467
        %639 = vst [vmem:[%s268 + $0x20] sm:$0xff] %v470
        %640 = vst [vmem:[%s268 + $0x28] sm:$0xff] %v473
        %641 = vst [vmem:[%s268 + $0x30] sm:$0xff] %v476
        %642 = vst [vmem:[%s268 + $0x38] sm:$0xff] %v479
        %643 = vst [vmem:[%s268 + $0x40] sm:$0xff] %v482
        %644 = vst [vmem:[%s268 + $0x48] sm:$0xff] %v485
        %645 = vst [vmem:[%s268 + $0x50] sm:$0xff] %v488
        %646 = vst [vmem:[%s268 + $0x58] sm:$0xff] %v491
        %647 = vst [vmem:[%s268 + $0x60] sm:$0xff] %v494
        %648 = vst [vmem:[%s268 + $0x68] sm:$0xff] %v497
        %649 = vst [vmem:[%s268 + $0x70] sm:$0xff] %v500
        %650 = vst [vmem:[%s268 + $0x78] sm:$0xff] %v503
        %651 = vst [vmem:[%s275] sm:$0xff] %v588
        %652 = vst [vmem:[%s275 + $0x8] sm:$0xff] %v591
        %653 = vst [vmem:[%s275 + $0x10] sm:$0xff] %v594
        %654 = vst [vmem:[%s275 + $0x18] sm:$0xff] %v597
        %655 = vst [vmem:[%s275 + $0x20] sm:$0xff] %v600
        %656 = vst [vmem:[%s275 + $0x28] sm:$0xff] %v603
        %657 = vst [vmem:[%s275 + $0x30] sm:$0xff] %v606
        %658 = vst [vmem:[%s275 + $0x38] sm:$0xff] %v609
        %659 = vst [vmem:[%s275 + $0x40] sm:$0xff] %v612
        %660 = vst [vmem:[%s275 + $0x48] sm:$0xff] %v615
        %661 = vst [vmem:[%s275 + $0x50] sm:$0xff] %v618
        %662 = vst [vmem:[%s275 + $0x58] sm:$0xff] %v621
        %663 = vst [vmem:[%s275 + $0x60] sm:$0xff] %v624
        %664 = vst [vmem:[%s275 + $0x68] sm:$0xff] %v627
        %665 = vst [vmem:[%s275 + $0x70] sm:$0xff] %v630
        %666 = vst [vmem:[%s275 + $0x78] sm:$0xff] %v633
        %s667 = sand.u32 %s112, 1
        %s668 = scalar_lea.sflag [#allocation4], %s667
        %s669 = sand.u32 %s112, 1
        %s670 = smul.addr %s669, 128
        %s671 = scalar_lea.vmem [#allocation7], %s670
        %s672 = sand.u32 %s142, 1
        %s673 = scalar_lea.sflag [#allocation9], %s672
        %s674 = sand.u32 %s142, 1
        %s675 = smul.addr %s674, 128
        %s676 = scalar_lea.vmem [#allocation8], %s675
        // Predicated region
        $region37: #{tpu_custom_call.1} parent=27 // pred_check
          %p677 = pneg %p122
        $region38: #{tpu_custom_call.1} parent=27 // pred_check_branch
          %679 = sbr.rel (%p677) target = $region40
        $region39: #{tpu_custom_call.1} parent=27 // pred_region
          %s680 = smul.u32 16, %s33
          %682 = vsyncadd %s668, 0
          %s683 = smul.addr %s34, 32
          %s684 = sadd.s32 %s680, %s683
          %s685 = smul.addr %s32, 64
          %s686 = sadd.s32 %s684, %s685
          %s687 = smul.addr %s686, 8
          %s688 = scalar_lea.hbm %s2, %s687
          %s689 = sshll.u32 %s671, 4
          %s690 = int_to_ptr.vmem [resolvable:$true] %s689
          %s691 = sshll.u32 %s688, 4
          %s692 = int_to_ptr.hbm [resolvable:$true] %s691
          %697 = dma.vmem_to_hbm [thread:$0]  %s690, 2048, %s692, %s668, 128, 128, 8
        $region40: #{tpu_custom_call.1} parent=27 // pred_fallthru
          _
        // Predicated region
        $region41: #{tpu_custom_call.1} parent=27 // pred_check
          %p698 = pneg %p152
        $region42: #{tpu_custom_call.1} parent=27 // pred_check_branch
          %700 = sbr.rel (%p698) target = $region44
        $region43: #{tpu_custom_call.1} parent=27 // pred_region
          %s701 = smul.u32 16, %s33
          %703 = vsyncadd %s673, 0
          %s704 = smul.addr %s34, 32
          %s705 = sadd.s32 %s701, %s704
          %s706 = smul.addr %s32, 64
          %s707 = sadd.s32 %s705, %s706
          %s708 = smul.addr %s707, 8
          %s709 = scalar_lea.hbm %s3, %s708
          %s710 = sshll.u32 %s676, 4
          %s711 = int_to_ptr.vmem [resolvable:$true] %s710
          %s712 = sshll.u32 %s709, 4
          %s713 = int_to_ptr.hbm [resolvable:$true] %s712
          %718 = dma.vmem_to_hbm [thread:$0]  %s711, 2048, %s713, %s673, 128, 128, 8
        $region44: #{tpu_custom_call.1} parent=27 // pred_fallthru
          _
      $region28: #{tpu_custom_call.1} parent=5 // pred_fallthru
        _
      %p719 = scmp.le.s32.totalorder 2, %s22
      // Predicated region
      $region45: #{tpu_custom_call.1} parent=5 // pred_check
        %p720 = pneg %p719
      $region46: #{tpu_custom_call.1} parent=5 // pred_check_branch
        %722 = sbr.rel (%p720) target = $region48
      $region47: #{tpu_custom_call.1} parent=5 // pred_region
        %s723 = ssub.s32 %s22, 2
        // Predicated region
        $region49: #{tpu_custom_call.1} parent=47 // pred_check
          %p724 = pneg %p128
        $region50: #{tpu_custom_call.1} parent=47 // pred_check_branch
          %726 = sbr.rel (%p724) target = $region52
        $region51: #{tpu_custom_call.1} parent=47 // pred_region
          %s727 = sand.u32 %s113, 1
          %s728 = scalar_lea.sflag [#allocation4], %s727
          %s729 = sand.u32 %s113, 1
          %s730 = smul.addr %s729, 128
          %s731 = scalar_lea.vmem [#allocation7], %s730
          %733 = dma.done %s728, 2048
        $region52: #{tpu_custom_call.1} parent=47 // pred_fallthru
          _
        // Predicated region
        $region53: #{tpu_custom_call.1} parent=47 // pred_check
          %p734 = pneg %p158
        $region54: #{tpu_custom_call.1} parent=47 // pred_check_branch
          %736 = sbr.rel (%p734) target = $region56
        $region55: #{tpu_custom_call.1} parent=47 // pred_region
          %s737 = sand.u32 %s143, 1
          %s738 = scalar_lea.sflag [#allocation9], %s737
          %s739 = sand.u32 %s143, 1
          %s740 = smul.addr %s739, 128
          %s741 = scalar_lea.vmem [#allocation8], %s740
          %743 = dma.done %s738, 2048
        $region56: #{tpu_custom_call.1} parent=47 // pred_fallthru
          _
      $region48: #{tpu_custom_call.1} parent=5 // pred_fallthru
        _
    $region6: #{tpu_custom_call.1} parent=1 // loop_footer
      %s26 = sadd.s32 1, %s22
    $region7: #{tpu_custom_call.1} parent=1 // loop_footer_branch
      %21 = sbr.rel target = $region3
    $region8: #{tpu_custom_call.1} parent=1 // loop_exit
      _
    %744 = vsyncpa [#allocation3], 1
    %s745 = scalar_lea.sflag [#allocation3], 1
    %746 = vsyncpa %s745, 1
    %747 = vsyncpa [#allocation6], 1
    %s748 = scalar_lea.sflag [#allocation6], 1
    %749 = vsyncpa %s748, 1
    %750 = vsyncpa [#allocation4], 1
    %s751 = scalar_lea.sflag [#allocation4], 1
    %752 = vsyncpa %s751, 1
    %753 = vsyncpa [#allocation9], 1
    %s754 = scalar_lea.sflag [#allocation9], 1
    %755 = vsyncpa %s754, 1

</llo_original>
